<compile_context>
chip_gen: v5e
topology: v5e:2x2
jax: 0.10.0
libtpu: 0.0.40
codegen_flags: <defaults>
</compile_context>

<pallas_src>
import functools

import jax
import jax.numpy as jnp
from jax.experimental import pallas as pl
from jax.experimental.pallas import tpu as pltpu


def _round_up(x, mult):
    return ((x + mult - 1) // mult) * mult


def _ntxent_kernel(didx_ref, cidx_ref, d_ref, ct_ref, out_ref,
                   m_sc, neg_sc, loss_sc, cnt_sc, *, m_valid):
    # Blocks: didx (TN,1) i32, cidx (1,TM) i32, d (TN,D) f32 (pre-normalized, /T folded),
    #         ct (D,TM) bf16 (pre-normalized), out (1,8,128) f32.
    # Scratch (per N tile, persists across the pass/M axes): m, neg_sum, loss, count (TN,1).
    p = pl.program_id(1)          # 0: row-max / negative-sum sweep, 1: positive-loss sweep
    mj = pl.program_id(2)
    tile_m = cidx_ref.shape[-1]

    @pl.when(jnp.logical_and(p == 0, mj == 0))
    def _():
        m_sc[...] = jnp.full_like(m_sc, -jnp.inf)
        neg_sc[...] = jnp.zeros_like(neg_sc)
        loss_sc[...] = jnp.zeros_like(loss_sc)
        cnt_sc[...] = jnp.zeros_like(cnt_sc)

    # (TN, D) x (D, TM) -> (TN, TM): bf16 MXU inputs, f32 accumulation.  Logits are already
    # divided by T (folded into the pre-normalized desc operand in the wrapper).
    s = jnp.dot(d_ref[...].astype(jnp.bfloat16), ct_ref[...],
                preferred_element_type=jnp.float32)

    # Relevance-miner mask: positive iff ids match (VPU broadcast compare).
    pos = didx_ref[...] == cidx_ref[...]                      # (TN,1) == (1,TM) -> (TN,TM)
    # Mask for padded code columns (kept out of the negative sum and the positives).
    col = mj * tile_m + jax.lax.broadcasted_iota(jnp.int32, (1, tile_m), 1)
    valid = col < m_valid                                     # (1, TM)

    @pl.when(p == 0)
    def _():
        s_v = jnp.where(valid, s, -jnp.inf)
        m_new = jnp.maximum(m_sc[...], jnp.max(s_v, axis=-1, keepdims=True))
        alpha = jnp.exp(m_sc[...] - m_new)                    # online rescale of old sum
        e = jnp.exp(s_v - m_new)                              # 0 at padded columns
        neg_sc[...] = alpha * neg_sc[...] + jnp.sum(jnp.where(pos, 0.0, e),
                                                    axis=-1, keepdims=True)
        m_sc[...] = m_new

    @pl.when(p == 1)
    def _():
        sm = s - m_sc[...]                                    # final row max
        e = jnp.exp(sm)
        # Exact form of -log( e_ij / (e_ij + neg_sum_i) ): no epsilon, no divide.
        losses = jnp.log(e + neg_sc[...]) - sm
        pos_v = jnp.logical_and(pos, valid)
        loss_sc[...] += jnp.sum(jnp.where(pos_v, losses, 0.0), axis=-1, keepdims=True)
        cnt_sc[...] += jnp.sum(pos_v.astype(jnp.float32), axis=-1, keepdims=True)

    @pl.when(jnp.logical_and(p == 1, mj == pl.num_programs(2) - 1))
    def _():
        total = jnp.sum(loss_sc[...])
        count = jnp.sum(cnt_sc[...])
        # Lane-dense output block: total at [0,0], count at [0,1], zeros elsewhere.
        r = jax.lax.broadcasted_iota(jnp.int32, (8, 128), 0)
        cc = jax.lax.broadcasted_iota(jnp.int32, (8, 128), 1)
        out_ref[0] = jnp.where(jnp.logical_and(r == 0, cc == 0), total,
                               jnp.where(jnp.logical_and(r == 0, cc == 1), count, 0.0))


def ntxent_loss(desc_idx, desc_rpr, code_idx, code_rpr, temperature=0.07,
                n_tile=128, m_tile=512):
    """desc_idx: (N,) ids, desc_rpr: (N, D), code_idx: any shape (flattened), code_rpr: (M, D)."""
    desc_idx = jnp.reshape(desc_idx, (-1,)).astype(jnp.int32)
    code_idx = jnp.reshape(code_idx, (-1,)).astype(jnp.int32)     # torch.flatten(code_idx)
    n, d_dim = desc_rpr.shape
    m = code_idx.shape[0]

    # --- Hoisted out of the kernel (done once, not per grid step): cosine normalization,
    # --- 1/temperature fold, bf16 cast and (D, M) layout of the code operand.
    inv_t = float(1.0 / temperature)
    d32 = desc_rpr.astype(jnp.float32)
    c32 = code_rpr.astype(jnp.float32)
    d_scale = jax.lax.rsqrt(jnp.maximum(jnp.sum(d32 * d32, axis=-1, keepdims=True), 1e-12))
    c_scale = jax.lax.rsqrt(jnp.maximum(jnp.sum(c32 * c32, axis=-1, keepdims=True), 1e-12))
    dn = d32 * (d_scale * inv_t)                              # (N, D) f32, logits already / T
    ct = (c32 * c_scale).astype(jnp.bfloat16).T               # (D, M) bf16, MXU-ready

    # --- Tiling: row tile multiple of 8 (default 128 — TN=8 starves the MXU and multiplies
    # --- per-step overhead); column tile multiple of 128 lanes.
    tile_n = _round_up(max(8, min(int(n_tile), _round_up(n, 8))), 8)
    tile_m = _round_up(max(128, min(int(m_tile), _round_up(m, 128))), 128)
    n_pad = (-n) % tile_n
    m_pad = (-m) % tile_m

    desc_sent = jnp.int32(-2 ** 31)        # padded desc rows: never match -> no positives
    code_sent = jnp.int32(-2 ** 31 + 1)    # padded code cols: never match; also column-masked
    if n_pad:
        desc_idx = jnp.concatenate([desc_idx, jnp.full((n_pad,), desc_sent, jnp.int32)])
        dn = jnp.concatenate([dn, jnp.zeros((n_pad, d_dim), jnp.float32)], axis=0)
    if m_pad:
        code_idx = jnp.concatenate([code_idx, jnp.full((m_pad,), code_sent, jnp.int32)])
        ct = jnp.concatenate([ct, jnp.zeros((d_dim, m_pad), jnp.bfloat16)], axis=1)

    n_padded, m_padded = n + n_pad, m + m_pad
    n_tiles, m_tiles = n_padded // tile_n, m_padded // tile_m

    didx2d = desc_idx.reshape(n_padded, 1)
    cidx2d = code_idx.reshape(1, m_padded)

    kernel = functools.partial(_ntxent_kernel, m_valid=int(m))

    # Grid: (N tiles ["parallel" -> megacore], pass {0: stats, 1: loss}, M tiles ["arbitrary"]).
    grid = (n_tiles, 2, m_tiles)

    cost = pl.CostEstimate(
        flops=2 * 2 * n_padded * m_padded * d_dim,            # two matmul sweeps over M
        transcendentals=3 * n_padded * m_padded,              # exp (pass 0) + exp + log (pass 1)
        bytes_accessed=(n_padded * d_dim * 4 + n_padded * 4
                        + n_tiles * 2 * (m_padded * d_dim * 2 + m_padded * 4)
                        + n_tiles * 8 * 128 * 4),
    )

    # Explicit VMEM budget: double-buffered tiles + lane-padded scratch + live f32 temporaries.
    vmem_bytes = (2 * (tile_n * d_dim * 4 + tile_n * 4)       # desc tile + ids (f32/i32)
                  + 2 * (d_dim * tile_m * 2 + tile_m * 4)     # code tile (bf16) + ids
                  + 2 * 8 * 128 * 4                           # output block
                  + 4 * tile_n * 128 * 4                      # scratch rows (lane-padded)
                  + 6 * tile_n * tile_m * 4                   # live f32 temporaries (s, e, ...)
                  + (4 << 20))                                # headroom
    vmem_limit = int(min(max(vmem_bytes, 32 << 20), 48 << 20))

    partials = pl.pallas_call(
        kernel,
        out_shape=jax.ShapeDtypeStruct((n_tiles, 8, 128), jnp.float32),
        grid=grid,
        in_specs=[
            pl.BlockSpec((tile_n, 1), lambda i, p, j: (i, 0)),        # desc ids (TN, 1)
            pl.BlockSpec((1, tile_m), lambda i, p, j: (0, j)),        # code ids (1, TM)
            pl.BlockSpec((tile_n, d_dim), lambda i, p, j: (i, 0)),    # desc     (TN, D) f32
            pl.BlockSpec((d_dim, tile_m), lambda i, p, j: (0, j)),    # code^T   (D, TM) bf16
        ],
        out_specs=pl.BlockSpec((1, 8, 128), lambda i, p, j: (i, 0, 0)),
        scratch_shapes=[pltpu.VMEM((tile_n, 1), jnp.float32)] * 4,    # m, neg_sum, loss, count
        compiler_params=pltpu.CompilerParams(
            dimension_semantics=("parallel", "arbitrary", "arbitrary"),
            vmem_limit_bytes=vmem_limit),
        cost_estimate=cost,
    )(didx2d, cidx2d, dn, ct)

    total = jnp.sum(partials[:, 0, 0])
    count = jnp.sum(partials[:, 0, 1])
    return total / jnp.maximum(count, 1.0)


def _ntxent_ref(desc_idx, desc_rpr, code_idx, code_rpr, temperature):
    """Pure-JAX f32 reference (same math, no bf16) for a sanity check."""
    desc_idx = jnp.reshape(desc_idx, (-1,))
    code_idx = jnp.reshape(code_idx, (-1,))
    dn = desc_rpr / jnp.maximum(jnp.linalg.norm(desc_rpr, axis=-1, keepdims=True), 1e-6)
    cn = code_rpr / jnp.maximum(jnp.linalg.norm(code_rpr, axis=-1, keepdims=True), 1e-6)
    s = (dn @ cn.T) / temperature
    pos = desc_idx[:, None] == code_idx[None, :]
    mx = jnp.max(s, axis=-1, keepdims=True)
    e = jnp.exp(s - mx)
    neg_sum = jnp.sum(jnp.where(pos, 0.0, e), axis=-1, keepdims=True)
    losses = jnp.log(e + neg_sum) - (s - mx)
    total = jnp.sum(jnp.where(pos, losses, 0.0))
    count = jnp.sum(pos.astype(jnp.float32))
    return total / jnp.maximum(count, 1.0)


if __name__ == "__main__":
    key = jax.random.PRNGKey(0)
    k1, k2, k3, k4 = jax.random.split(key, 4)

    temperature = 0.07

    # --- Small test (single tile both ways).
    N, M, D = 16, 16, 32
    desc_idx = jnp.arange(N, dtype=jnp.int32) % 8
    code_idx = (jnp.arange(M, dtype=jnp.int32) % 8).reshape(M, 1)  # flattened inside
    desc_rpr = jax.random.normal(k1, (N, D), dtype=jnp.float32)
    code_rpr = jax.random.normal(k2, (M, D), dtype=jnp.float32)

    loss = ntxent_loss(desc_idx, desc_rpr, code_idx, code_rpr, temperature)
    loss = jax.block_until_ready(loss)
    assert jnp.isfinite(loss), "loss is not finite"
    ref = _ntxent_ref(desc_idx, desc_rpr, code_idx, code_rpr, temperature)
    # Generous tolerance: the similarity matmul runs in bf16 (f32 accumulation).
    assert abs(float(loss) - float(ref)) < 0.15 * max(1.0, abs(float(ref))), (
        f"kernel {float(loss)} vs ref {float(ref)}")

    # --- Multi-tile test: exercises N/M padding, several M blocks and both passes.
    N2, M2, D2 = 40, 300, 64
    desc_idx2 = jnp.arange(N2, dtype=jnp.int32) % 7
    code_idx2 = (jnp.arange(M2, dtype=jnp.int32) % 9).reshape(M2, 1)
    desc_rpr2 = jax.random.normal(k3, (N2, D2), dtype=jnp.float32)
    code_rpr2 = jax.random.normal(k4, (M2, D2), dtype=jnp.float32)

    loss2 = ntxent_loss(desc_idx2, desc_rpr2, code_idx2, code_rpr2, temperature,
                        n_tile=16, m_tile=128)
    loss2 = jax.block_until_ready(loss2)
    assert jnp.isfinite(loss2), "loss2 is not finite"
    ref2 = _ntxent_ref(desc_idx2, desc_rpr2, code_idx2, code_rpr2, temperature)
    assert abs(float(loss2) - float(ref2)) < 0.15 * max(1.0, abs(float(ref2))), (
        f"kernel {float(loss2)} vs ref {float(ref2)}")

    print("KERNEL_OK")
</pallas_src>

<mosaic_0001>
module attributes {stable_mosaic.version = 11 : i64} {
  func.func @_ntxent_kernel(%arg0: i32, %arg1: i32, %arg2: i32, %arg3: memref<16x1xi32, #tpu.memory_space<vmem>>, %arg4: memref<1x128xi32, #tpu.memory_space<vmem>>, %arg5: memref<16x32xf32, #tpu.memory_space<vmem>>, %arg6: memref<32x128xbf16, #tpu.memory_space<vmem>>, %arg7: memref<1x8x128xf32, #tpu.memory_space<vmem>>, %arg8: memref<16x1xf32, #tpu.memory_space<vmem>>, %arg9: memref<16x1xf32, #tpu.memory_space<vmem>>, %arg10: memref<16x1xf32, #tpu.memory_space<vmem>>, %arg11: memref<16x1xf32, #tpu.memory_space<vmem>>) attributes {dimension_semantics = [#tpu.dimension_semantics<parallel>, #tpu.dimension_semantics<arbitrary>, #tpu.dimension_semantics<arbitrary>], iteration_bounds = array<i64: 1, 2, 1>, scalar_prefetch = 0 : i64, scratch_operands = 4 : i64, tpu.core_type = #tpu.core_type<tc>, window_params = [{transform_indices = @transform_0, window_bounds = array<i64: 16, 1>}, {transform_indices = @transform_1, window_bounds = array<i64: 1, 128>}, {transform_indices = @transform_2, window_bounds = array<i64: 16, 32>}, {transform_indices = @transform_3, window_bounds = array<i64: 32, 128>}, {transform_indices = @transform_4, window_bounds = array<i64: 1, 8, 128>}]} {
    %c0_i32 = arith.constant 0 : i32
    %0 = arith.cmpi eq, %arg1, %c0_i32 : i32
    %c0_i32_0 = arith.constant 0 : i32
    %1 = arith.cmpi eq, %arg2, %c0_i32_0 : i32
    %2 = arith.andi %0, %1 : i1
    %3 = arith.extui %2 : i1 to i32
    %c0_i32_1 = arith.constant 0 : i32
    %4 = arith.cmpi ne, %3, %c0_i32_1 : i32
    scf.if %4 {
      %cst_15 = arith.constant 0xFF800000 : f32
      %31 = vector.broadcast %cst_15 : f32 to vector<16x1xf32>
      %c0_16 = arith.constant 0 : index
      %c0_17 = arith.constant 0 : index
      %32 = vector.load %arg8[%c0_16, %c0_17] : memref<16x1xf32, #tpu.memory_space<vmem>>, vector<16x1xf32>
      tpu.vector_store %arg8[%c0_16, %c0_17], %31 {strides = array<i32>} : memref<16x1xf32, #tpu.memory_space<vmem>>, vector<16x1xf32>,
      %cst_18 = arith.constant 0.000000e+00 : f32
      %33 = vector.broadcast %cst_18 : f32 to vector<16x1xf32>
      %c0_19 = arith.constant 0 : index
      %c0_20 = arith.constant 0 : index
      %34 = vector.load %arg9[%c0_19, %c0_20] : memref<16x1xf32, #tpu.memory_space<vmem>>, vector<16x1xf32>
      tpu.vector_store %arg9[%c0_19, %c0_20], %33 {strides = array<i32>} : memref<16x1xf32, #tpu.memory_space<vmem>>, vector<16x1xf32>,
      %cst_21 = arith.constant 0.000000e+00 : f32
      %35 = vector.broadcast %cst_21 : f32 to vector<16x1xf32>
      %c0_22 = arith.constant 0 : index
      %c0_23 = arith.constant 0 : index
      %36 = vector.load %arg10[%c0_22, %c0_23] : memref<16x1xf32, #tpu.memory_space<vmem>>, vector<16x1xf32>
      tpu.vector_store %arg10[%c0_22, %c0_23], %35 {strides = array<i32>} : memref<16x1xf32, #tpu.memory_space<vmem>>, vector<16x1xf32>,
      %cst_24 = arith.constant 0.000000e+00 : f32
      %37 = vector.broadcast %cst_24 : f32 to vector<16x1xf32>
      %c0_25 = arith.constant 0 : index
      %c0_26 = arith.constant 0 : index
      %38 = vector.load %arg11[%c0_25, %c0_26] : memref<16x1xf32, #tpu.memory_space<vmem>>, vector<16x1xf32>
      tpu.vector_store %arg11[%c0_25, %c0_26], %37 {strides = array<i32>} : memref<16x1xf32, #tpu.memory_space<vmem>>, vector<16x1xf32>,
    } else {
    }
    %c0 = arith.constant 0 : index
    %c0_2 = arith.constant 0 : index
    %5 = vector.load %arg5[%c0, %c0_2] : memref<16x32xf32, #tpu.memory_space<vmem>>, vector<16x32xf32>
    %6 = arith.truncf %5 : vector<16x32xf32> to vector<16x32xbf16>
    %c0_3 = arith.constant 0 : index
    %c0_4 = arith.constant 0 : index
    %7 = vector.load %arg6[%c0_3, %c0_4] : memref<32x128xbf16, #tpu.memory_space<vmem>>, vector<32x128xbf16>
    %cst = arith.constant dense<0.000000e+00> : vector<16x128xf32>
    %8 = tpu.matmul %6, %7, %cst {dimension_numbers = #tpu.dot_dimension_numbers<[1], [0], [0], [1], [0, 0, 1, 1], [], []>} : vector<16x32xbf16>, vector<32x128xbf16>, vector<16x128xf32> -> vector<16x128xf32>
    %c0_5 = arith.constant 0 : index
    %c0_6 = arith.constant 0 : index
    %9 = vector.load %arg3[%c0_5, %c0_6] : memref<16x1xi32, #tpu.memory_space<vmem>>, vector<16x1xi32>
    %c0_7 = arith.constant 0 : index
    %c0_8 = arith.constant 0 : index
    %10 = vector.load %arg4[%c0_7, %c0_8] : memref<1x128xi32, #tpu.memory_space<vmem>>, vector<1x128xi32>
    %11 = vector.broadcast %9 : vector<16x1xi32> to vector<16x128xi32>
    %12 = vector.broadcast %10 : vector<1x128xi32> to vector<16x128xi32>
    %13 = arith.cmpi eq, %11, %12 : vector<16x128xi32>
    %c128_i32 = arith.constant 128 : i32
    %14 = arith.muli %arg2, %c128_i32 : i32
    %15 = tpu.iota {dimensions = array<i32: 1>} : vector<1x128xi32>
    %16 = vector.broadcast %14 : i32 to vector<1x128xi32>
    %17 = arith.addi %16, %15 : vector<1x128xi32>
    %c16_i32 = arith.constant 16 : i32
    %18 = vector.broadcast %c16_i32 : i32 to vector<1x128xi32>
    %19 = arith.cmpi slt, %17, %18 : vector<1x128xi32>
    %c0_i32_9 = arith.constant 0 : i32
    %20 = arith.cmpi eq, %arg1, %c0_i32_9 : i32
    %21 = arith.extui %20 : i1 to i32
    %c0_i32_10 = arith.constant 0 : i32
    %22 = arith.cmpi ne, %21, %c0_i32_10 : i32
    scf.if %22 {
      %cst_15 = arith.constant 0xFF800000 : f32
      %31 = vector.shape_cast %19 : vector<1x128xi1> to vector<1x128xi1>
      %32 = vector.broadcast %31 : vector<1x128xi1> to vector<16x128xi1>
      %33 = vector.broadcast %cst_15 : f32 to vector<16x128xf32>
      %34 = arith.select %32, %8, %33 : vector<16x128xi1>, vector<16x128xf32>
      %c0_16 = arith.constant 0 : index
      %c0_17 = arith.constant 0 : index
      %35 = vector.load %arg8[%c0_16, %c0_17] : memref<16x1xf32, #tpu.memory_space<vmem>>, vector<16x1xf32>
      %cst_18 = arith.constant dense<0xFF800000> : vector<16xf32>
      %36 = vector.multi_reduction <maximumf>, %34, %cst_18 [1] : vector<16x128xf32> to vector<16xf32>
      %37 = vector.shape_cast %36 : vector<16xf32> to vector<16x1xf32>
      %38 = arith.maximumf %35, %37 : vector<16x1xf32>
      %c0_19 = arith.constant 0 : index
      %c0_20 = arith.constant 0 : index
      %39 = vector.load %arg8[%c0_19, %c0_20] : memref<16x1xf32, #tpu.memory_space<vmem>>, vector<16x1xf32>
      %40 = arith.subf %39, %38 : vector<16x1xf32>
      %41 = math.exp %40 : vector<16x1xf32>
      %42 = vector.broadcast %38 : vector<16x1xf32> to vector<16x128xf32>
      %43 = arith.subf %34, %42 : vector<16x128xf32>
      %44 = math.exp %43 : vector<16x128xf32>
      %c0_21 = arith.constant 0 : index
      %c0_22 = arith.constant 0 : index
      %45 = vector.load %arg9[%c0_21, %c0_22] : memref<16x1xf32, #tpu.memory_space<vmem>>, vector<16x1xf32>
      %46 = arith.mulf %41, %45 : vector<16x1xf32>
      %cst_23 = arith.constant 0.000000e+00 : f32
      %47 = vector.broadcast %cst_23 : f32 to vector<16x128xf32>
      %48 = arith.select %13, %47, %44 : vector<16x128xi1>, vector<16x128xf32>
      %cst_24 = arith.constant dense<0.000000e+00> : vector<16xf32>
      %49 = vector.multi_reduction <add>, %48, %cst_24 [1] : vector<16x128xf32> to vector<16xf32>
      %50 = vector.shape_cast %49 : vector<16xf32> to vector<16x1xf32>
      %51 = arith.addf %46, %50 : vector<16x1xf32>
      %c0_25 = arith.constant 0 : index
      %c0_26 = arith.constant 0 : index
      %52 = vector.load %arg9[%c0_25, %c0_26] : memref<16x1xf32, #tpu.memory_space<vmem>>, vector<16x1xf32>
      tpu.vector_store %arg9[%c0_25, %c0_26], %51 {strides = array<i32>} : memref<16x1xf32, #tpu.memory_space<vmem>>, vector<16x1xf32>,
      %c0_27 = arith.constant 0 : index
      %c0_28 = arith.constant 0 : index
      %53 = vector.load %arg8[%c0_27, %c0_28] : memref<16x1xf32, #tpu.memory_space<vmem>>, vector<16x1xf32>
      tpu.vector_store %arg8[%c0_27, %c0_28], %38 {strides = array<i32>} : memref<16x1xf32, #tpu.memory_space<vmem>>, vector<16x1xf32>,
    } else {
    }
    %c1_i32 = arith.constant 1 : i32
    %23 = arith.cmpi eq, %arg1, %c1_i32 : i32
    %24 = arith.extui %23 : i1 to i32
    %c0_i32_11 = arith.constant 0 : i32
    %25 = arith.cmpi ne, %24, %c0_i32_11 : i32
    scf.if %25 {
      %c0_15 = arith.constant 0 : index
      %c0_16 = arith.constant 0 : index
      %31 = vector.load %arg8[%c0_15, %c0_16] : memref<16x1xf32, #tpu.memory_space<vmem>>, vector<16x1xf32>
      %32 = vector.broadcast %31 : vector<16x1xf32> to vector<16x128xf32>
      %33 = arith.subf %8, %32 : vector<16x128xf32>
      %34 = math.exp %33 : vector<16x128xf32>
      %c0_17 = arith.constant 0 : index
      %c0_18 = arith.constant 0 : index
      %35 = vector.load %arg9[%c0_17, %c0_18] : memref<16x1xf32, #tpu.memory_space<vmem>>, vector<16x1xf32>
      %36 = vector.broadcast %35 : vector<16x1xf32> to vector<16x128xf32>
      %37 = arith.addf %34, %36 : vector<16x128xf32>
      %38 = math.log %37 : vector<16x128xf32>
      %39 = arith.subf %38, %33 : vector<16x128xf32>
      %40 = vector.broadcast %19 : vector<1x128xi1> to vector<16x128xi1>
      %41 = arith.andi %13, %40 : vector<16x128xi1>
      %c0_19 = arith.constant 0 : index
      %c0_20 = arith.constant 0 : index
      %42 = vector.load %arg10[%c0_19, %c0_20] : memref<16x1xf32, #tpu.memory_space<vmem>>, vector<16x1xf32>
      %cst_21 = arith.constant 0.000000e+00 : f32
      %43 = vector.broadcast %cst_21 : f32 to vector<16x128xf32>
      %44 = arith.select %41, %39, %43 : vector<16x128xi1>, vector<16x128xf32>
      %cst_22 = arith.constant dense<0.000000e+00> : vector<16xf32>
      %45 = vector.multi_reduction <add>, %44, %cst_22 [1] : vector<16x128xf32> to vector<16xf32>
      %46 = vector.shape_cast %45 : vector<16xf32> to vector<16x1xf32>
      %47 = arith.addf %42, %46 : vector<16x1xf32>
      %c0_23 = arith.constant 0 : index
      %c0_24 = arith.constant 0 : index
      %48 = vector.load %arg10[%c0_23, %c0_24] : memref<16x1xf32, #tpu.memory_space<vmem>>, vector<16x1xf32>
      tpu.vector_store %arg10[%c0_23, %c0_24], %47 {strides = array<i32>} : memref<16x1xf32, #tpu.memory_space<vmem>>, vector<16x1xf32>,
      %c0_25 = arith.constant 0 : index
      %c0_26 = arith.constant 0 : index
      %49 = vector.load %arg11[%c0_25, %c0_26] : memref<16x1xf32, #tpu.memory_space<vmem>>, vector<16x1xf32>
      %50 = arith.extui %41 : vector<16x128xi1> to vector<16x128xi32>
      %51 = arith.sitofp %50 : vector<16x128xi32> to vector<16x128xf32>
      %cst_27 = arith.constant dense<0.000000e+00> : vector<16xf32>
      %52 = vector.multi_reduction <add>, %51, %cst_27 [1] : vector<16x128xf32> to vector<16xf32>
      %53 = vector.shape_cast %52 : vector<16xf32> to vector<16x1xf32>
      %54 = arith.addf %49, %53 : vector<16x1xf32>
      %c0_28 = arith.constant 0 : index
      %c0_29 = arith.constant 0 : index
      %55 = vector.load %arg11[%c0_28, %c0_29] : memref<16x1xf32, #tpu.memory_space<vmem>>, vector<16x1xf32>
      tpu.vector_store %arg11[%c0_28, %c0_29], %54 {strides = array<i32>} : memref<16x1xf32, #tpu.memory_space<vmem>>, vector<16x1xf32>,
    } else {
    }
    %c1_i32_12 = arith.constant 1 : i32
    %26 = arith.cmpi eq, %arg1, %c1_i32_12 : i32
    %c0_i32_13 = arith.constant 0 : i32
    %27 = arith.cmpi eq, %arg2, %c0_i32_13 : i32
    %28 = arith.andi %26, %27 : i1
    %29 = arith.extui %28 : i1 to i32
    %c0_i32_14 = arith.constant 0 : i32
    %30 = arith.cmpi ne, %29, %c0_i32_14 : i32
    scf.if %30 {
      %c0_15 = arith.constant 0 : index
      %c0_16 = arith.constant 0 : index
      %31 = vector.load %arg10[%c0_15, %c0_16] : memref<16x1xf32, #tpu.memory_space<vmem>>, vector<16x1xf32>
      %32 = vector.shape_cast %31 : vector<16x1xf32> to vector<1x16x1xf32>
      %cst_17 = arith.constant dense<0.000000e+00> : vector<1xf32>
      %33 = vector.multi_reduction <add>, %32, %cst_17 [1, 2] : vector<1x16x1xf32> to vector<1xf32>
      %34 = vector.shape_cast %33 : vector<1xf32> to vector<1x1x1xf32>
      %35 = vector.extract %34[0, 0, 0] : f32 from vector<1x1x1xf32>
      %c0_18 = arith.constant 0 : index
      %c0_19 = arith.constant 0 : index
      %36 = vector.load %arg11[%c0_18, %c0_19] : memref<16x1xf32, #tpu.memory_space<vmem>>, vector<16x1xf32>
      %37 = vector.shape_cast %36 : vector<16x1xf32> to vector<1x16x1xf32>
      %cst_20 = arith.constant dense<0.000000e+00> : vector<1xf32>
      %38 = vector.multi_reduction <add>, %37, %cst_20 [1, 2] : vector<1x16x1xf32> to vector<1xf32>
      %39 = vector.shape_cast %38 : vector<1xf32> to vector<1x1x1xf32>
      %40 = vector.extract %39[0, 0, 0] : f32 from vector<1x1x1xf32>
      %41 = tpu.iota {dimensions = array<i32: 0>} : vector<8x128xi32>
      %42 = tpu.iota {dimensions = array<i32: 1>} : vector<8x128xi32>
      %c0_i32_21 = arith.constant 0 : i32
      %43 = vector.broadcast %c0_i32_21 : i32 to vector<8x128xi32>
      %44 = arith.cmpi eq, %41, %43 : vector<8x128xi32>
      %c0_i32_22 = arith.constant 0 : i32
      %45 = vector.broadcast %c0_i32_22 : i32 to vector<8x128xi32>
      %46 = arith.cmpi eq, %42, %45 : vector<8x128xi32>
      %47 = arith.andi %44, %46 : vector<8x128xi1>
      %c0_i32_23 = arith.constant 0 : i32
      %48 = vector.broadcast %c0_i32_23 : i32 to vector<8x128xi32>
      %49 = arith.cmpi eq, %41, %48 : vector<8x128xi32>
      %c1_i32_24 = arith.constant 1 : i32
      %50 = vector.broadcast %c1_i32_24 : i32 to vector<8x128xi32>
      %51 = arith.cmpi eq, %42, %50 : vector<8x128xi32>
      %52 = arith.andi %49, %51 : vector<8x128xi1>
      %cst_25 = arith.constant 0.000000e+00 : f32
      %53 = vector.broadcast %40 : f32 to vector<8x128xf32>
      %54 = vector.broadcast %cst_25 : f32 to vector<8x128xf32>
      %55 = arith.select %52, %53, %54 : vector<8x128xi1>, vector<8x128xf32>
      %56 = vector.broadcast %35 : f32 to vector<8x128xf32>
      %57 = arith.select %47, %56, %55 : vector<8x128xi1>, vector<8x128xf32>
      %c0_26 = arith.constant 0 : index
      %c0_27 = arith.constant 0 : index
      %c0_28 = arith.constant 0 : index
      %58 = vector.load %arg7[%c0_26, %c0_27, %c0_28] : memref<1x8x128xf32, #tpu.memory_space<vmem>>, vector<1x8x128xf32>
      %59 = vector.shape_cast %58 : vector<1x8x128xf32> to vector<8x128xf32>
      %60 = vector.shape_cast %57 : vector<8x128xf32> to vector<1x8x128xf32>
      tpu.vector_store %arg7[%c0_26, %c0_27, %c0_28], %60 {strides = array<i32>} : memref<1x8x128xf32, #tpu.memory_space<vmem>>, vector<1x8x128xf32>,
    } else {
    }
    return
  }
  func.func @transform_0(%arg0: i32, %arg1: i32, %arg2: i32) -> (i32, i32) {
    %c0_i32 = arith.constant 0 : i32
    %c0_i32_0 = arith.constant 0 : i32
    return %arg0, %c0_i32 : i32, i32
  }
  func.func @transform_1(%arg0: i32, %arg1: i32, %arg2: i32) -> (i32, i32) {
    %c0_i32 = arith.constant 0 : i32
    %c0_i32_0 = arith.constant 0 : i32
    return %c0_i32, %arg2 : i32, i32
  }
  func.func @transform_2(%arg0: i32, %arg1: i32, %arg2: i32) -> (i32, i32) {
    %c0_i32 = arith.constant 0 : i32
    %c0_i32_0 = arith.constant 0 : i32
    return %arg0, %c0_i32 : i32, i32
  }
  func.func @transform_3(%arg0: i32, %arg1: i32, %arg2: i32) -> (i32, i32) {
    %c0_i32 = arith.constant 0 : i32
    %c0_i32_0 = arith.constant 0 : i32
    return %c0_i32, %arg2 : i32, i32
  }
  func.func @transform_4(%arg0: i32, %arg1: i32, %arg2: i32) -> (i32, i32, i32) {
    %c0_i32 = arith.constant 0 : i32
    %c0_i32_0 = arith.constant 0 : i32
    %c0_i32_1 = arith.constant 0 : i32
    return %arg0, %c0_i32, %c0_i32_0 : i32, i32, i32
  }
}

</mosaic_0001>

<llo_original>
// kernel: tpu_custom_call.1
$region0: #{tpu_custom_call.1}
  #allocation0 [shape = 'u32[]', space=smem, size = 0x4, offset = 0x4, fixed_abs, tag = 'smem constant byte address 0x4 - core index']
  #allocation1 [shape = 'u32[72,128]{1,0:T(1,128)}', space=vmem, size = 0x9000, scoped, tag = 'internal scratch']
  #allocation2 [shape = 'f32[16,1]{1,0:T(8,128)}', space=vmem, size = 0x2000, scoped, tag = 'scratch operand']
  #allocation3 [shape = 'f32[16,1]{1,0:T(8,128)}', space=vmem, size = 0x2000, scoped, tag = 'scratch operand']
  #allocation4 [shape = 'f32[16,1]{1,0:T(8,128)}', space=vmem, size = 0x2000, scoped, tag = 'scratch operand']
  #allocation5 [shape = 'f32[16,1]{1,0:T(8,128)}', space=vmem, size = 0x2000, scoped, tag = 'scratch operand']
  %s0 = inlined_call_operand.vmem [shape: s32[16,1], index: 0, kind: input, shape index: {}]
  %s1 = inlined_call_operand.vmem [shape: s32[1,128], index: 1, kind: input, shape index: {}]
  %s2 = inlined_call_operand.vmem [shape: f32[16,32], index: 2, kind: input, shape index: {}]
  %s3 = inlined_call_operand.hbm [shape: bf16[32,128], index: 3, kind: input, shape index: {}]
  %s4 = inlined_call_operand.hbm [shape: f32[1,8,128], index: 4, kind: output, shape index: {}]
  %s5 = sld [smem:[#allocation0]]
  $region69: #{tpu_custom_call.1} parent=0
    _
  %s7 = ssub.s32 1, %s5
  %s8 = scalar_select 0, %s7, %s5
  $region1: #{tpu_custom_call.1} parent=0
    #allocation6 [shape = 'u8[8192]{0}', space=vmem, size = 0x2000, scoped, tag = 'input window, operand 3, single buffered']
    #allocation7 [shape = 's32[2]{0}', space=sflag, size = 0x8, scoped, tag = 'scoped memory for tpu_custom_call.1']
    #allocation8 [shape = 's32[2]{0}', space=sflag, size = 0x8, scoped, tag = 'scoped memory for tpu_custom_call.1']
    #allocation9 [shape = 'u8[4096]{0}', space=vmem, size = 0x1000, scoped, tag = 'output window, operand 0, single buffered']
    %9 = vsyncpa [#allocation7], 0
    %10 = vsyncpa [#allocation8], 0
    loop: start=0, step=1, limit=4
    $region2: #{tpu_custom_call.1} parent=1 // loop_pre_header
      _
    $region3: #{tpu_custom_call.1} parent=1 // loop_header
      %s12 = sphi 0, %s16
      %p13 = scmp.ge.s32.totalorder %s12, 4
      %s19 = sphi 0, %s38
      %s20 = sphi 0, %s34
      %s21 = sphi 0, %s30
      %s22 = sphi 0, %s19
      %s23 = sphi 0, %s20
      %s24 = sphi 0, %s21
      %s25 = sphi 0, %s22
      %s26 = sphi 0, %s23
      %s27 = sphi 0, %s24
      %s41 = sphi 0, %s43
      %s44 = sphi 0, %s41
      %s45 = sphi 0, %s44
      %s61 = sphi 0, %s45
      %s67 = sphi 0, %s69
      %s70 = sphi 0, %s67
      %s71 = sphi 0, %s70
      %s87 = sphi 0, %s71
      %s93 = sphi 0, %s95
      %s96 = sphi 0, %s93
      %s97 = sphi 0, %s96
      %s113 = sphi 0, %s97
      %s119 = sphi 0, %s121
      %s122 = sphi 0, %s119
      %s123 = sphi 0, %s122
      %s139 = sphi 0, %s123
      %s145 = sphi 0, %s147
      %s148 = sphi 0, %s145
      %s149 = sphi 0, %s148
      %s165 = sphi 0, %s149
    $region4: #{tpu_custom_call.1} parent=1 // loop_header_branch
      %15 = sbr.rel (%p13) target = $region8
    $region5: #{tpu_custom_call.1} parent=1 // loop_body
      %s17 = ssub.s32 %s12, 1
      %s18 = ssub.s32 %s12, 2
      %s28 = sadd.s32 1, %s21
      %p29 = scmp.ge.s32.totalorder %s28, 1
      %s30 = scalar_select %p29, 0, %s28
      %s31 = sadd.s32 1, %s20
      %s32 = scalar_select %p29, %s31, %s20
      %p33 = scmp.ge.s32.totalorder %s32, 2
      %s34 = scalar_select %p33, 0, %s32
      %s35 = sadd.s32 1, %s19
      %s36 = scalar_select %p33, %s35, %s19
      %p37 = scmp.ge.s32.totalorder %s36, 1
      %s38 = scalar_select %p37, 0, %s36
      %s39 = ssub.s32 %s19, %s38
      %p40 = scmp.eq.s32.totalorder %s39, 0
      %s42 = sadd.s32 %s41, 1
      %s43 = scalar_select %p40, %s41, %s42
      %p46 = pneg %p40
      %p47 = scmp.eq.s32.totalorder %s12, 1
      %p48 = por %p46, %p47
      %p49 = scmp.ne.s32.totalorder %s41, %s44
      %p50 = scmp.eq.s32.totalorder %s12, 0
      %p51 = por %p49, %p50
      %p52 = scmp.ne.s32.totalorder %s41, %s44
      %p53 = scmp.eq.s32.totalorder %s17, 1
      %p54 = por %p52, %p53
      %p55 = scmp.ne.s32.totalorder %s44, %s45
      %p56 = scmp.eq.s32.totalorder %s17, 0
      %p57 = por %p55, %p56
      %p58 = scmp.ne.s32.totalorder %s44, %s45
      %p59 = scmp.eq.s32.totalorder %s18, 1
      %p60 = por %p58, %p59
      %p62 = scmp.ne.s32.totalorder %s45, %s61
      %p63 = scmp.eq.s32.totalorder %s18, 0
      %p64 = por %p62, %p63
      %s65 = ssub.s32 %s21, %s30
      %p66 = scmp.eq.s32.totalorder %s65, 0
      %s68 = sadd.s32 %s67, 1
      %s69 = scalar_select %p66, %s67, %s68
      %p72 = pneg %p66
      %p73 = scmp.eq.s32.totalorder %s12, 1
      %p74 = por %p72, %p73
      %p75 = scmp.ne.s32.totalorder %s67, %s70
      %p76 = scmp.eq.s32.totalorder %s12, 0
      %p77 = por %p75, %p76
      %p78 = scmp.ne.s32.totalorder %s67, %s70
      %p79 = scmp.eq.s32.totalorder %s17, 1
      %p80 = por %p78, %p79
      %p81 = scmp.ne.s32.totalorder %s70, %s71
      %p82 = scmp.eq.s32.totalorder %s17, 0
      %p83 = por %p81, %p82
      %p84 = scmp.ne.s32.totalorder %s70, %s71
      %p85 = scmp.eq.s32.totalorder %s18, 1
      %p86 = por %p84, %p85
      %p88 = scmp.ne.s32.totalorder %s71, %s87
      %p89 = scmp.eq.s32.totalorder %s18, 0
      %p90 = por %p88, %p89
      %s91 = ssub.s32 %s19, %s38
      %p92 = scmp.eq.s32.totalorder %s91, 0
      %s94 = sadd.s32 %s93, 1
      %s95 = scalar_select %p92, %s93, %s94
      %p98 = pneg %p92
      %p99 = scmp.eq.s32.totalorder %s12, 1
      %p100 = por %p98, %p99
      %p101 = scmp.ne.s32.totalorder %s93, %s96
      %p102 = scmp.eq.s32.totalorder %s12, 0
      %p103 = por %p101, %p102
      %p104 = scmp.ne.s32.totalorder %s93, %s96
      %p105 = scmp.eq.s32.totalorder %s17, 1
      %p106 = por %p104, %p105
      %p107 = scmp.ne.s32.totalorder %s96, %s97
      %p108 = scmp.eq.s32.totalorder %s17, 0
      %p109 = por %p107, %p108
      %p110 = scmp.ne.s32.totalorder %s96, %s97
      %p111 = scmp.eq.s32.totalorder %s18, 1
      %p112 = por %p110, %p111
      %p114 = scmp.ne.s32.totalorder %s97, %s113
      %p115 = scmp.eq.s32.totalorder %s18, 0
      %p116 = por %p114, %p115
      %s117 = ssub.s32 %s21, %s30
      %p118 = scmp.eq.s32.totalorder %s117, 0
      %s120 = sadd.s32 %s119, 1
      %s121 = scalar_select %p118, %s119, %s120
      %p124 = pneg %p118
      %p125 = scmp.eq.s32.totalorder %s12, 1
      %p126 = por %p124, %p125
      %p127 = scmp.ne.s32.totalorder %s119, %s122
      %p128 = scmp.eq.s32.totalorder %s12, 0
      %p129 = por %p127, %p128
      %p130 = scmp.ne.s32.totalorder %s119, %s122
      %p131 = scmp.eq.s32.totalorder %s17, 1
      %p132 = por %p130, %p131
      %p133 = scmp.ne.s32.totalorder %s122, %s123
      %p134 = scmp.eq.s32.totalorder %s17, 0
      %p135 = por %p133, %p134
      %p136 = scmp.ne.s32.totalorder %s122, %s123
      %p137 = scmp.eq.s32.totalorder %s18, 1
      %p138 = por %p136, %p137
      %p140 = scmp.ne.s32.totalorder %s123, %s139
      %p141 = scmp.eq.s32.totalorder %s18, 0
      %p142 = por %p140, %p141
      %s143 = ssub.s32 %s19, %s38
      %p144 = scmp.eq.s32.totalorder %s143, 0
      %s146 = sadd.s32 %s145, 1
      %s147 = scalar_select %p144, %s145, %s146
      %p150 = pneg %p144
      %p151 = scmp.eq.s32.totalorder %s12, 1
      %p152 = por %p150, %p151
      %p153 = scmp.ne.s32.totalorder %s145, %s148
      %p154 = scmp.eq.s32.totalorder %s12, 0
      %p155 = por %p153, %p154
      %p156 = scmp.ne.s32.totalorder %s145, %s148
      %p157 = scmp.eq.s32.totalorder %s17, 1
      %p158 = por %p156, %p157
      %p159 = scmp.ne.s32.totalorder %s148, %s149
      %p160 = scmp.eq.s32.totalorder %s17, 0
      %p161 = por %p159, %p160
      %p162 = scmp.ne.s32.totalorder %s148, %s149
      %p163 = scmp.eq.s32.totalorder %s18, 1
      %p164 = por %p162, %p163
      %p166 = scmp.ne.s32.totalorder %s149, %s165
      %p167 = scmp.eq.s32.totalorder %s18, 0
      %p168 = por %p166, %p167
      %p169 = scmp.le.s32.totalorder 1, %s12
      %p170 = scmp.lt.s32.totalorder %s12, 3
      %p171 = pnand %p169, %p170
      %p172 = pneg %p171
      // Predicated region
      $region9: #{tpu_custom_call.1} parent=5 // pred_check
        _
      $region10: #{tpu_custom_call.1} parent=5 // pred_check_branch
        %174 = sbr.rel (%p171) target = $region12
      $region11: #{tpu_custom_call.1} parent=5 // pred_region
        %s175 = ssub.s32 %s12, 1
        // Predicated region
        $region13: #{tpu_custom_call.1} parent=11 // pred_check
          %p176 = pneg %p57
        $region14: #{tpu_custom_call.1} parent=11 // pred_check_branch
          %178 = sbr.rel (%p176) target = $region16
        $region15: #{tpu_custom_call.1} parent=11 // pred_region
          %s179 = smul.u32 2, %s22
          %p180 = scmp.lt.s32.totalorder %s179, 1
          %s181 = scalar_select %p180, %s179, 1
          %s182 = smul.addr %s181, 8
          %s183 = scalar_lea.vmem %s0, %s182
          %s184 = smul.u32 2, %s22
        $region16: #{tpu_custom_call.1} parent=11 // pred_fallthru
          _
        // Predicated region
        $region17: #{tpu_custom_call.1} parent=11 // pred_check
          %p185 = pneg %p83
        $region18: #{tpu_custom_call.1} parent=11 // pred_check_branch
          %187 = sbr.rel (%p185) target = $region20
        $region19: #{tpu_custom_call.1} parent=11 // pred_region
          %p188 = scmp.lt.s32.totalorder %s24, 0
          %s189 = scalar_select %p188, %s24, 0
          %s190 = scalar_lea.vmem %s1, %s189
        $region20: #{tpu_custom_call.1} parent=11 // pred_fallthru
          _
        // Predicated region
        $region21: #{tpu_custom_call.1} parent=11 // pred_check
          %p191 = pneg %p109
        $region22: #{tpu_custom_call.1} parent=11 // pred_check_branch
          %193 = sbr.rel (%p191) target = $region24
        $region23: #{tpu_custom_call.1} parent=11 // pred_region
          %s194 = smul.u32 2, %s22
          %p195 = scmp.lt.s32.totalorder %s194, 1
          %s196 = scalar_select %p195, %s194, 1
          %s197 = smul.addr %s196, 8
          %s198 = scalar_lea.vmem %s2, %s197
          %s199 = smul.u32 2, %s22
        $region24: #{tpu_custom_call.1} parent=11 // pred_fallthru
          _
        // Predicated region
        $region25: #{tpu_custom_call.1} parent=11 // pred_check
          %p200 = pneg %p135
        $region26: #{tpu_custom_call.1} parent=11 // pred_check_branch
          %202 = sbr.rel (%p200) target = $region28
        $region27: #{tpu_custom_call.1} parent=11 // pred_region
          %204 = vsyncadd [#allocation7], 0
          %s205 = smul.addr %s24, 4
          %s206 = scalar_lea.hbm %s3, %s205
          %s207 = sshll.u32 %s206, 4
          %s208 = int_to_ptr.hbm [resolvable:$true] %s207
          %s209 = sshll.u32 [#allocation6], 4
          %s210 = int_to_ptr.vmem [resolvable:$true] %s209
          %215 = dma.hbm_to_vmem [thread:$0]  %s208, 256, %s210, [#allocation7], 64, 64, 4
        $region28: #{tpu_custom_call.1} parent=11 // pred_fallthru
          _
      $region12: #{tpu_custom_call.1} parent=5 // pred_fallthru
        _
      %p216 = scmp.lt.s32.totalorder %s12, 2
      // Predicated region
      $region29: #{tpu_custom_call.1} parent=5 // pred_check
        %p217 = pneg %p216
      $region30: #{tpu_custom_call.1} parent=5 // pred_check_branch
        %219 = sbr.rel (%p217) target = $region32
      $region31: #{tpu_custom_call.1} parent=5 // pred_region
        _
      $region32: #{tpu_custom_call.1} parent=5 // pred_fallthru
        _
      %p220 = scmp.le.s32.totalorder 1, %s12
      %p221 = scmp.lt.s32.totalorder %s12, 3
      %p222 = pnand %p220, %p221
      %p223 = pneg %p222
      // Predicated region
      $region33: #{tpu_custom_call.1} parent=5 // pred_check
        _
      $region34: #{tpu_custom_call.1} parent=5 // pred_check_branch
        %225 = sbr.rel (%p222) target = $region36
      $region35: #{tpu_custom_call.1} parent=5 // pred_region
        %s226 = ssub.s32 %s12, 1
        // Predicated region
        $region37: #{tpu_custom_call.1} parent=35 // pred_check
          %p227 = pneg %p135
        $region38: #{tpu_custom_call.1} parent=35 // pred_check_branch
          %229 = sbr.rel (%p227) target = $region40
        $region39: #{tpu_custom_call.1} parent=35 // pred_region
          %231 = dma.done [#allocation7], 256
        $region40: #{tpu_custom_call.1} parent=35 // pred_fallthru
          _
        %s232 = smul.u32 2, %s22
        %p233 = scmp.lt.s32.totalorder %s232, 1
        %s234 = scalar_select %p233, %s232, 1
        %s235 = smul.addr %s234, 8
        %s236 = scalar_lea.vmem %s0, %s235
        %p237 = pneg %p57
        %p238 = pneg %p54
        %p239 = scmp.lt.s32.totalorder %s24, 0
        %s240 = scalar_select %p239, %s24, 0
        %s241 = scalar_lea.vmem %s1, %s240
        %p242 = pneg %p83
        %p243 = pneg %p80
        %s244 = smul.u32 2, %s22
        %p245 = scmp.lt.s32.totalorder %s244, 1
        %s246 = scalar_select %p245, %s244, 1
        %s247 = smul.addr %s246, 8
        %s248 = scalar_lea.vmem %s2, %s247
        %p249 = pneg %p109
        %p250 = pneg %p106
        %p251 = pneg %p135
        %p252 = pneg %p132
        %p253 = pneg %p161
        %p254 = pneg %p158
        %s255 = smul.u32 2, %s22
        %p256 = scmp.lt.s32.totalorder %s255, 1
        %s257 = scalar_select %p256, %s255, 1
        %s258 = smul.addr %s257, 8
        %s259 = scalar_lea.vmem %s0, %s258
        %s260 = smul.u32 2, %s22
        %p261 = scmp.lt.s32.totalorder %s24, 0
        %s262 = scalar_select %p261, %s24, 0
        %s263 = scalar_lea.vmem %s1, %s262
        %s264 = smul.u32 2, %s22
        %p265 = scmp.lt.s32.totalorder %s264, 1
        %s266 = scalar_select %p265, %s264, 1
        %s267 = smul.addr %s266, 8
        %s268 = scalar_lea.vmem %s2, %s267
        %s269 = smul.u32 2, %s22
        %p271 = scmp.eq.s32.totalorder %s23, 0
        %p272 = scmp.eq.s32.totalorder %s24, 0
        %p273 = pnand %p271, %p272
        %p274 = pneg %p273
        // Predicated region
        $region41: #{tpu_custom_call.1} parent=35 // pred_check
          _
        $region42: #{tpu_custom_call.1} parent=35 // pred_check_branch
          %276 = sbr.rel (%p273) target = $region44
        $region43: #{tpu_custom_call.1} parent=35 // pred_region
          %vm277 = vcmask 7168
          %278 = vst.msk [vmem:[#allocation2] sm:$0xff] %vm277, -inf
          %279 = vst.msk [vmem:[#allocation2 + $0x8] sm:$0xff] %vm277, -inf
          %280 = vst.msk [vmem:[#allocation3] sm:$0xff] %vm277, 0.0
          %281 = vst.msk [vmem:[#allocation3 + $0x8] sm:$0xff] %vm277, 0.0
          %282 = vst.msk [vmem:[#allocation4] sm:$0xff] %vm277, 0.0
          %283 = vst.msk [vmem:[#allocation4 + $0x8] sm:$0xff] %vm277, 0.0
          %284 = vst.msk [vmem:[#allocation5] sm:$0xff] %vm277, 0.0
          %285 = vst.msk [vmem:[#allocation5 + $0x8] sm:$0xff] %vm277, 0.0
        $region44: #{tpu_custom_call.1} parent=35 // pred_fallthru
          _
        %v286 = vld [vmem:[%s268] sm:$0xff]
        %v287 = vld [vmem:[%s268 + $0x8] sm:$0xff]
        %v288 = vpack.c.bf16 %v287, %v286
        %v289 = vld [vmem:[#allocation6] sm:$0xf]
        %v290 = vld [vmem:[#allocation6 + $0x4] sm:$0xf]
        %v291 = vld [vmem:[#allocation6 + $0x8] sm:$0xf]
        %v292 = vld [vmem:[#allocation6 + $0xc] sm:$0xf]
        %v297 = vunpack.c.l.b16 %v289
        %v298 = vunpack.c.l.b16 %v290
        %v299 = vunpack.c.l.b16 %v291
        %v300 = vunpack.c.l.b16 %v292
        %v301 = vpack.c.b16 %v298, %v297
        %v302 = vpack.c.b16 %v300, %v299
        %vm305 = vcmask 261120
        %v307 = vsel %vm305, %v288, 0
        %309 = vmatpush.bf16.msra.mxu0 0
        %310 = vmatpush.bf16.msra.mxu0 0
        %311 = vmatpush.bf16.msra.mxu0 0
        %312 = vmatpush.bf16.msra.mxu0 0
        %313 = vmatpush.bf16.msra.mxu0 0
        %314 = vmatpush.bf16.msra.mxu0 0
        %315 = vmatpush.bf16.msra.mxu0 %v302
        %316 = vmatpush.bf16.msra.mxu0 %v301
        %317 = vmatmul.bf16.gmra.mxu0 %v307
        %v318 = vpop.f32.mrf.mxu0
        %v319 = vadd.f32 0.0, %v318
        %v320 = vpop.f32.mrf.mxu0
        %v321 = vadd.f32 0.0, %v320
        %322 = vdwg.mxu0
        %v323 = vld [vmem:[%s259] sm:$0xff]
        %v324 = vld [vmem:[%s259 + $0x8] sm:$0xff]
        %v325 = vld [vmem:[%s263] sm:$0x1]
        %326 = vset.pattern.permute.xlu0 0
        %327 = vperm.xlu0 %326, %v323
        %v328 = vpop.permute.xlu0 %327
        %329 = vset.pattern.permute.xlu0 0
        %330 = vperm.xlu0 %329, %v324
        %v331 = vpop.permute.xlu0 %330
        %v332 = vperm.slane %v325, 0
        %vm333 = vcmp.eq.s32.totalorder %v328, %v332
        %vm334 = vcmp.eq.s32.totalorder %v331, %v332
        %s335 = smul.u32 %s24, 128
        %v336 = vlaneseq
        %v337 = vand.u32 %v336, 127
        %v338 = vstv %s335
        %v339 = vadd.s32 %v338, %v337
        %vm340 = vcmp.lt.s32.totalorder %v339, 16
        // Predicated region
        $region45: #{tpu_custom_call.1} parent=35 // pred_check
          %p341 = pneg %p271
        $region46: #{tpu_custom_call.1} parent=35 // pred_check_branch
          %343 = sbr.rel (%p341) target = $region48
        $region47: #{tpu_custom_call.1} parent=35 // pred_region
          %v344 = vsel %vm340, 1, 0
          %vm345 = vcmp.eq.s32.totalorder %v344, 1
          %v346 = vsel %vm345, %v319, -inf
          %v347 = vsel %vm345, %v321, -inf
          %v348 = vld [vmem:[#allocation2] sm:$0xff]
          %v349 = vld [vmem:[#allocation2 + $0x8] sm:$0xff]
          %350 = vmax.xlane.f32.xlu0 %v346
          %v351 = vpop.xlane.xlu0 %350
          %352 = vmax.xlane.f32.xlu0 %v347
          %v353 = vpop.xlane.xlu0 %352
          %v354 = vmax.f32 %v348, %v351
          %v355 = vmax.f32 %v349, %v353
          %v356 = vsub.f32 %v348, %v354
          %v357 = vsub.f32 %v349, %v355
          %v358 = vmul.f32 %v356, 1.442695
          %v359 = vpow.pop %v358
          %v360 = vmul.f32 %v357, 1.442695
          %v361 = vpow.pop %v360
          %363 = vset.pattern.permute.xlu0 0
          %364 = vperm.xlu0 %363, %v354
          %v365 = vpop.permute.xlu0 %364
          %368 = vset.pattern.permute.xlu0 0
          %369 = vperm.xlu0 %368, %v355
          %v370 = vpop.permute.xlu0 %369
          %v372 = vsub.f32 %v346, %v365
          %v373 = vsub.f32 %v347, %v370
          %v374 = vmul.f32 %v372, 1.442695
          %v375 = vpow.pop %v374
          %v376 = vmul.f32 %v373, 1.442695
          %v377 = vpow.pop %v376
          %v378 = vld [vmem:[#allocation3] sm:$0xff]
          %v379 = vld [vmem:[#allocation3 + $0x8] sm:$0xff]
          %v380 = vmul.f32 %v359, %v378
          %v381 = vmul.f32 %v361, %v379
          %v382 = vsel %vm333, 0.0, %v375
          %v383 = vsel %vm334, 0.0, %v377
          %384 = vadd.xlane.f32.xlu0 %v382
          %v385 = vpop.xlane.xlu0 %384
          %386 = vadd.xlane.f32.xlu0 %v383
          %v387 = vpop.xlane.xlu0 %386
          %v388 = vadd.f32 %v380, %v385
          %v389 = vadd.f32 %v381, %v387
          %vm390 = vcmask 7168
          %391 = vst.msk [vmem:[#allocation3] sm:$0xff] %vm390, %v388
          %392 = vst.msk [vmem:[#allocation3 + $0x8] sm:$0xff] %vm390, %v389
          %393 = vst.msk [vmem:[#allocation2] sm:$0xff] %vm390, %v354
          %394 = vst.msk [vmem:[#allocation2 + $0x8] sm:$0xff] %vm390, %v355
        $region48: #{tpu_custom_call.1} parent=35 // pred_fallthru
          _
        %p395 = scmp.eq.s32.totalorder %s23, 1
        // Predicated region
        $region49: #{tpu_custom_call.1} parent=35 // pred_check
          %p396 = pneg %p395
        $region50: #{tpu_custom_call.1} parent=35 // pred_check_branch
          %398 = sbr.rel (%p396) target = $region52
        $region51: #{tpu_custom_call.1} parent=35 // pred_region
          %v399 = vld [vmem:[#allocation2] sm:$0xff]
          %v400 = vld [vmem:[#allocation2 + $0x8] sm:$0xff]
          %402 = vset.pattern.permute.xlu0 0
          %403 = vperm.xlu0 %402, %v399
          %v404 = vpop.permute.xlu0 %403
          %407 = vset.pattern.permute.xlu0 0
          %408 = vperm.xlu0 %407, %v400
          %v409 = vpop.permute.xlu0 %408
          %v411 = vsub.f32 %v319, %v404
          %v412 = vsub.f32 %v321, %v409
          %v413 = vmul.f32 %v411, 1.442695
          %v414 = vpow.pop %v413
          %v415 = vmul.f32 %v412, 1.442695
          %v416 = vpow.pop %v415
          %v417 = vld [vmem:[#allocation3] sm:$0xff]
          %v418 = vld [vmem:[#allocation3 + $0x8] sm:$0xff]
          %420 = vset.pattern.permute.xlu0 0
          %421 = vperm.xlu0 %420, %v417
          %v422 = vpop.permute.xlu0 %421
          %425 = vset.pattern.permute.xlu0 0
          %426 = vperm.xlu0 %425, %v418
          %v427 = vpop.permute.xlu0 %426
          %v429 = vadd.f32 %v414, %v422
          %v430 = vadd.f32 %v416, %v427
          %v431 = vlog2.pop %v429
          %v432 = vmul.f32 %v431, 0.6931472
          %v433 = vlog2.pop %v430
          %v434 = vmul.f32 %v433, 0.6931472
          %v435 = vsub.f32 %v432, %v411
          %v436 = vsub.f32 %v434, %v412
          %v437 = vsel %vm340, 1, 0
          %vm438 = vcmp.eq.s32.totalorder %v437, 1
          %vm439 = vmand %vm333, %vm438
          %vm440 = vmand %vm334, %vm438
          %v441 = vld [vmem:[#allocation4] sm:$0xff]
          %v442 = vld [vmem:[#allocation4 + $0x8] sm:$0xff]
          %v443 = vsel %vm439, %v435, 0.0
          %v444 = vsel %vm440, %v436, 0.0
          %445 = vadd.xlane.f32.xlu0 %v443
          %v446 = vpop.xlane.xlu0 %445
          %447 = vadd.xlane.f32.xlu0 %v444
          %v448 = vpop.xlane.xlu0 %447
          %v449 = vadd.f32 %v441, %v446
          %v450 = vadd.f32 %v442, %v448
          %vm451 = vcmask 7168
          %452 = vst.msk [vmem:[#allocation4] sm:$0xff] %vm451, %v449
          %453 = vst.msk [vmem:[#allocation4 + $0x8] sm:$0xff] %vm451, %v450
          %v454 = vld [vmem:[#allocation5] sm:$0xff]
          %v455 = vld [vmem:[#allocation5 + $0x8] sm:$0xff]
          %v456 = vsel %vm439, 1, 0
          %v457 = vsel %vm440, 1, 0
          %v458 = vcvt.s32.f32 %v456
          %v459 = vcvt.s32.f32 %v457
          %460 = vadd.xlane.f32.xlu0 %v458
          %v461 = vpop.xlane.xlu0 %460
          %462 = vadd.xlane.f32.xlu0 %v459
          %v463 = vpop.xlane.xlu0 %462
          %v464 = vadd.f32 %v454, %v461
          %v465 = vadd.f32 %v455, %v463
          %466 = vst.msk [vmem:[#allocation5] sm:$0xff] %vm451, %v464
          %467 = vst.msk [vmem:[#allocation5 + $0x8] sm:$0xff] %vm451, %v465
        $region52: #{tpu_custom_call.1} parent=35 // pred_fallthru
          _
        %p468 = pnand %p395, %p272
        %p469 = pneg %p468
        // Predicated region
        $region53: #{tpu_custom_call.1} parent=35 // pred_check
          _
        $region54: #{tpu_custom_call.1} parent=35 // pred_check_branch
          %471 = sbr.rel (%p468) target = $region56
        $region55: #{tpu_custom_call.1} parent=35 // pred_region
          %v472 = vld [vmem:[#allocation4] sm:$0xff]
          %v473 = vld [vmem:[#allocation4 + $0x8] sm:$0xff]
          %vm474 = vcmask 7168
          %v475 = vsel %vm474, %v472, 0.0
          %v476 = vsel %vm474, %v473, 0.0
          %v477 = vadd.f32 %v475, %v476
          %478 = vadd.xlane.f32.xlu0 %v477
          %v479 = vpop.xlane.xlu0 %478
          %v480 = vrot.slane %v479, 4
          %v481 = vadd.f32 %v479, %v480
          %v482 = vrot.slane %v481, 2
          %v483 = vadd.f32 %v481, %v482
          %v484 = vrot.slane %v483, 1
          %v485 = vadd.f32 %v483, %v484
          %s486 = vtos %v485
          %v487 = vld [vmem:[#allocation5] sm:$0xff]
          %v488 = vld [vmem:[#allocation5 + $0x8] sm:$0xff]
          %v489 = vsel %vm474, %v487, 0.0
          %v490 = vsel %vm474, %v488, 0.0
          %v491 = vadd.f32 %v489, %v490
          %492 = vadd.xlane.f32.xlu0 %v491
          %v493 = vpop.xlane.xlu0 %492
          %v494 = vrot.slane %v493, 4
          %v495 = vadd.f32 %v493, %v494
          %v496 = vrot.slane %v495, 2
          %v497 = vadd.f32 %v495, %v496
          %v498 = vrot.slane %v497, 1
          %v499 = vadd.f32 %v497, %v498
          %s500 = vtos %v499
          %v501 = vlaneseq
          %v502 = vshrl.u32 %v501, 7
          %vm503 = vcmp.eq.s32.totalorder %v502, 0
          %vm504 = vcmp.eq.s32.totalorder %v337, 0
          %vm505 = vmand %vm503, %vm504
          %vm506 = vcmp.eq.s32.totalorder %v337, 1
          %vm507 = vmand %vm503, %vm506
          %v508 = vstv %s500
          %v509 = vsel %vm507, %v508, 0.0
          %v510 = vstv %s486
          %v511 = vsel %vm505, %v510, %v509
          %512 = vst [vmem:[#allocation9] sm:$0xff] %v511
        $region56: #{tpu_custom_call.1} parent=35 // pred_fallthru
          _
        // Predicated region
        $region57: #{tpu_custom_call.1} parent=35 // pred_check
          %p513 = pneg %p158
        $region58: #{tpu_custom_call.1} parent=35 // pred_check_branch
          %515 = sbr.rel (%p513) target = $region60
        $region59: #{tpu_custom_call.1} parent=35 // pred_region
          %517 = vsyncadd [#allocation8], 0
          %s518 = smul.addr %s22, 8
          %s519 = scalar_lea.hbm %s4, %s518
          %s521 = sshll.u32 [#allocation9], 4
          %s522 = int_to_ptr.vmem [resolvable:$true] %s521
          %s523 = sshll.u32 %s519, 4
          %s524 = int_to_ptr.hbm [resolvable:$true] %s523
          %526 = dma.vmem_to_hbm [thread:$0]  %s522, 128, %s524, [#allocation8]
        $region60: #{tpu_custom_call.1} parent=35 // pred_fallthru
          _
        // Predicated region
        $region61: #{tpu_custom_call.1} parent=35 // pred_check
          %p527 = pneg %p158
        $region62: #{tpu_custom_call.1} parent=35 // pred_check_branch
          %529 = sbr.rel (%p527) target = $region64
        $region63: #{tpu_custom_call.1} parent=35 // pred_region
          %531 = dma.done [#allocation8], 128
        $region64: #{tpu_custom_call.1} parent=35 // pred_fallthru
          _
      $region36: #{tpu_custom_call.1} parent=5 // pred_fallthru
        _
      %p532 = scmp.le.s32.totalorder 2, %s12
      // Predicated region
      $region65: #{tpu_custom_call.1} parent=5 // pred_check
        %p533 = pneg %p532
      $region66: #{tpu_custom_call.1} parent=5 // pred_check_branch
        %535 = sbr.rel (%p533) target = $region68
      $region67: #{tpu_custom_call.1} parent=5 // pred_region
        %s536 = ssub.s32 %s12, 2
      $region68: #{tpu_custom_call.1} parent=5 // pred_fallthru
        _
    $region6: #{tpu_custom_call.1} parent=1 // loop_footer
      %s16 = sadd.s32 1, %s12
    $region7: #{tpu_custom_call.1} parent=1 // loop_footer_branch
      %11 = sbr.rel target = $region3
    $region8: #{tpu_custom_call.1} parent=1 // loop_exit
      _
    %537 = vsyncpa [#allocation7], 1
    %s538 = scalar_lea.sflag [#allocation7], 1
    %539 = vsyncpa %s538, 1
    %540 = vsyncpa [#allocation8], 1
    %s541 = scalar_lea.sflag [#allocation8], 1
    %542 = vsyncpa %s541, 1

</llo_original>
